<compile_context>
chip_gen: v7x
topology: tpu7x:2x2x1
jax: 0.10.0
libtpu: 0.0.40
codegen_flags: <defaults>
</compile_context>

<pallas_src>
import functools

import jax
import jax.numpy as jnp
from jax.experimental import pallas as pl
from jax.experimental.pallas import tpu as pltpu

_LANE = 128          # TPU lane width
_NEG_PAD = -1e30     # bias pad for unused logit columns -> exp() == 0
_MIN_SPLIT = 256     # split a single-tile batch above this size (v7x 2 TCs)


def _round_up(x, m):
    return ((x + m - 1) // m) * m


def actor_kernel(x_ref, w_ref, b_ref, o_ref, *, n_states, h_pad):
    """Fused fc1->ReLU->fc2->ReLU->fc3->softmax for one batch tile.

    w_ref: packed [n_states + 2*h_pad, h_pad] slab = [w1_p; w2_p; w3_p]
           (lane & K dims zero-padded to h_pad, a multiple of 128).
    b_ref: packed [3, h_pad] slab; rows 0/1 (b1/b2) zero-padded, row 2 (b3)
           padded with -1e30 so padded logit columns vanish under softmax.
    """
    x = x_ref[...]

    # Static slices of the packed parameter slabs (zero-cost views).
    w1 = w_ref[0:n_states, :]
    w2 = w_ref[n_states:n_states + h_pad, :]
    w3 = w_ref[n_states + h_pad:n_states + 2 * h_pad, :]
    b1 = b_ref[0:1, :]
    b2 = b_ref[1:2, :]
    b3 = b_ref[2:3, :]

    # fc1 + ReLU, fc2 + ReLU, fc3 (MXU matmuls, f32 accumulation).
    # Padded hidden columns of h1/h2 are exactly 0 (zero weights + zero bias),
    # so the zero-padded K rows of w2/w3 contribute nothing.
    h1 = jnp.maximum(jnp.dot(x, w1, preferred_element_type=jnp.float32) + b1, 0.0)
    h2 = jnp.maximum(jnp.dot(h1, w2, preferred_element_type=jnp.float32) + b2, 0.0)
    logits = jnp.dot(h2, w3, preferred_element_type=jnp.float32) + b3

    # Numerically-stable softmax over the last (lane) dim.  Padded columns sit
    # at ~-1e30, so exp underflows to 0 and they drop out of the denominator.
    m = jnp.max(logits, axis=-1, keepdims=True)
    e = jnp.exp(logits - m)
    denom = jnp.sum(e, axis=-1, keepdims=True)
    # Exact division (not approx reciprocal): rows sum to 1 to f32 rounding.
    o_ref[...] = (e / denom).astype(o_ref.dtype)


def pack_actor_params(w1, b1, w2, b2, w3, b3):
    """Pack the 6 parameter arrays into two lane-padded VMEM slabs.

    Call this ONCE per parameter update (not per forward pass).
    # TODO(synk): for hidden >= 256 on v6e/v7x, store the weight slab in bf16
    # (MXU bf16 rate) and keep all elementwise math in f32 (v5e has no bf16 VPU).
    """
    n_states, hidden = w1.shape
    n_actions = w3.shape[1]
    h_pad = _round_up(max(hidden, n_actions), _LANE)

    w1_p = jnp.pad(w1, ((0, 0), (0, h_pad - hidden)))
    w2_p = jnp.pad(w2, ((0, h_pad - hidden), (0, h_pad - hidden)))
    w3_p = jnp.pad(w3, ((0, h_pad - hidden), (0, h_pad - n_actions)))
    w_slab = jnp.concatenate([w1_p, w2_p, w3_p], axis=0).astype(jnp.float32)

    b1_p = jnp.pad(b1, ((0, 0), (0, h_pad - hidden)))
    b2_p = jnp.pad(b2, ((0, 0), (0, h_pad - hidden)))
    b3_p = jnp.pad(b3, ((0, 0), (0, h_pad - n_actions)), constant_values=_NEG_PAD)
    b_slab = jnp.concatenate([b1_p, b2_p, b3_p], axis=0).astype(jnp.float32)
    return w_slab, b_slab


@functools.partial(jax.jit, static_argnames=("n_actions", "tm"))
def actor_forward_packed(x, w_slab, b_slab, *, n_actions, tm=1024):
    """Forward pass on pre-packed slabs.  Returns (B, n_actions) probabilities."""
    B, n_states = x.shape
    k_total, h_pad = w_slab.shape
    assert k_total == n_states + 2 * h_pad
    assert h_pad % _LANE == 0 and n_actions <= h_pad

    # Batch tiling: tm rows per grid step, sublane-aligned.  No padding of x:
    # the ragged last tile (if any) is handled by Pallas boundary clamping.
    tm_eff = min(max(8, _round_up(tm, 8)), _round_up(B, 8))
    n_tiles = pl.cdiv(B, tm_eff)
    if n_tiles == 1 and B >= 2 * _MIN_SPLIT:
        # Give v7x's second TensorCore something to do on large single-tile batches.
        tm_eff = _round_up(pl.cdiv(B, 2), 8)
        n_tiles = pl.cdiv(B, tm_eff)
    grid = (n_tiles,)

    flops = 2 * B * k_total * h_pad
    bytes_accessed = 4 * (x.size + B * h_pad + w_slab.size + b_slab.size)

    out = pl.pallas_call(
        functools.partial(actor_kernel, n_states=n_states, h_pad=h_pad),
        out_shape=jax.ShapeDtypeStruct((B, h_pad), jnp.float32),
        grid_spec=pltpu.PrefetchScalarGridSpec(
            num_scalar_prefetch=0,
            grid=grid,
            in_specs=[
                pl.BlockSpec((tm_eff, n_states), lambda i: (i, 0)),
                # Constant index_map -> weights/biases stay VMEM-resident.
                pl.BlockSpec((k_total, h_pad), lambda i: (0, 0)),
                pl.BlockSpec((3, h_pad), lambda i: (0, 0)),
            ],
            out_specs=pl.BlockSpec((tm_eff, h_pad), lambda i: (i, 0)),
        ),
        compiler_params=pltpu.CompilerParams(
            dimension_semantics=("parallel",)),  # shards batch across v7x TCs
        cost_estimate=pl.CostEstimate(
            flops=flops, transcendentals=B * h_pad,
            bytes_accessed=bytes_accessed),
    )(x, w_slab, b_slab)

    # Drop the zero-probability padded lanes (lane-dense store, cheap slice).
    # TODO(synk): if downstream only needs sampled actions, fuse Gumbel-max
    # sampling (pltpu.prng_seed / prng_random_bits) and emit (B, 1) int32.
    return out[:, :n_actions]


def actor_forward(x, w1, b1, w2, b2, w3, b3, *, tm=1024):
    """Convenience wrapper: packs params then runs the fused kernel."""
    w_slab, b_slab = pack_actor_params(w1, b1, w2, b2, w3, b3)
    return actor_forward_packed(x, w_slab, b_slab,
                                n_actions=w3.shape[1], tm=tm)


def init_linear_params(key, fan_in, fan_out):
    """Deterministic init mimicking nn.Linear's uniform(-1/sqrt(fan_in), ...)."""
    kw, kb = jax.random.split(key)
    bound = 1.0 / jnp.sqrt(jnp.float32(fan_in))
    w = jax.random.uniform(kw, (fan_in, fan_out), jnp.float32, -bound, bound)
    b = jax.random.uniform(kb, (1, fan_out), jnp.float32, -bound, bound)
    return w, b


def reference_forward(x, w1, b1, w2, b2, w3, b3):
    h1 = jnp.maximum(x @ w1 + b1, 0.0)
    h2 = jnp.maximum(h1 @ w2 + b2, 0.0)
    return jax.nn.softmax(h2 @ w3 + b3, axis=-1)


if __name__ == "__main__":
    # Small shapes consistent with the module (hidden_dim kept small for test).
    batch, n_states, hidden_dim, n_actions = 80, 32, 64, 8

    key = jax.random.PRNGKey(0)
    kx, k1, k2, k3 = jax.random.split(key, 4)

    x = jax.random.normal(kx, (batch, n_states), jnp.float32)
    w1, b1 = init_linear_params(k1, n_states, hidden_dim)
    w2, b2 = init_linear_params(k2, hidden_dim, hidden_dim)
    w3, b3 = init_linear_params(k3, hidden_dim, n_actions)

    # Pack once (parameter-update time), then run the jitted forward.
    w_slab, b_slab = pack_actor_params(w1, b1, w2, b2, w3, b3)
    out = actor_forward_packed(x, w_slab, b_slab, n_actions=n_actions)
    out = jax.block_until_ready(out)

    ref = reference_forward(x, w1, b1, w2, b2, w3, b3)
    assert out.shape == (batch, n_actions)
    assert jnp.allclose(out, ref, atol=1e-3, rtol=1e-3)
    # Exact-division softmax: rows sum to 1 to f32 rounding error.
    assert jnp.allclose(jnp.sum(out, axis=-1), 1.0, atol=1e-3)
    assert bool(jnp.all(out >= 0.0))

    print("KERNEL_OK")
</pallas_src>

<mosaic_0001>
module attributes {stable_mosaic.version = 11 : i64} {
  func.func @actor_kernel(%arg0: i32, %arg1: memref<80x32xf32, #tpu.memory_space<vmem>>, %arg2: memref<288x128xf32, #tpu.memory_space<vmem>>, %arg3: memref<3x128xf32, #tpu.memory_space<vmem>>, %arg4: memref<80x128xf32, #tpu.memory_space<vmem>>) attributes {dimension_semantics = [#tpu.dimension_semantics<parallel>], iteration_bounds = array<i64: 1>, scalar_prefetch = 0 : i64, scratch_operands = 0 : i64, tpu.core_type = #tpu.core_type<tc>, window_params = [{transform_indices = @transform_0, window_bounds = array<i64: 80, 32>}, {pipeline_mode = #tpu.pipeline_mode<synchronous>, transform_indices = @transform_1, window_bounds = array<i64: 288, 128>}, {pipeline_mode = #tpu.pipeline_mode<synchronous>, transform_indices = @transform_2, window_bounds = array<i64: 3, 128>}, {transform_indices = @transform_3, window_bounds = array<i64: 80, 128>}]} {
    %c0 = arith.constant 0 : index
    %c0_0 = arith.constant 0 : index
    %0 = vector.load %arg1[%c0, %c0_0] : memref<80x32xf32, #tpu.memory_space<vmem>>, vector<80x32xf32>
    %c0_1 = arith.constant 0 : index
    %c0_2 = arith.constant 0 : index
    %1 = vector.load %arg2[%c0_1, %c0_2] : memref<288x128xf32, #tpu.memory_space<vmem>>, vector<32x128xf32>
    %c32 = arith.constant 32 : index
    %c0_3 = arith.constant 0 : index
    %2 = vector.load %arg2[%c32, %c0_3] : memref<288x128xf32, #tpu.memory_space<vmem>>, vector<128x128xf32>
    %c160 = arith.constant 160 : index
    %c0_4 = arith.constant 0 : index
    %3 = vector.load %arg2[%c160, %c0_4] : memref<288x128xf32, #tpu.memory_space<vmem>>, vector<128x128xf32>
    %c0_5 = arith.constant 0 : index
    %c0_6 = arith.constant 0 : index
    %4 = vector.load %arg3[%c0_5, %c0_6] : memref<3x128xf32, #tpu.memory_space<vmem>>, vector<1x128xf32>
    %c1 = arith.constant 1 : index
    %c0_7 = arith.constant 0 : index
    %5 = vector.load %arg3[%c1, %c0_7] : memref<3x128xf32, #tpu.memory_space<vmem>>, vector<1x128xf32>
    %c2 = arith.constant 2 : index
    %c0_8 = arith.constant 0 : index
    %6 = vector.load %arg3[%c2, %c0_8] : memref<3x128xf32, #tpu.memory_space<vmem>>, vector<1x128xf32>
    %cst = arith.constant dense<0.000000e+00> : vector<80x128xf32>
    %7 = tpu.matmul %0, %1, %cst {dimension_numbers = #tpu.dot_dimension_numbers<[1], [0], [0], [1], [0, 0, 1, 1], [], []>} : vector<80x32xf32>, vector<32x128xf32>, vector<80x128xf32> -> vector<80x128xf32>
    %8 = vector.broadcast %4 : vector<1x128xf32> to vector<80x128xf32>
    %9 = arith.addf %7, %8 : vector<80x128xf32>
    %cst_9 = arith.constant 0.000000e+00 : f32
    %10 = vector.broadcast %cst_9 : f32 to vector<80x128xf32>
    %11 = arith.maximumf %9, %10 : vector<80x128xf32>
    %cst_10 = arith.constant dense<0.000000e+00> : vector<80x128xf32>
    %12 = tpu.matmul %11, %2, %cst_10 {dimension_numbers = #tpu.dot_dimension_numbers<[1], [0], [0], [1], [0, 0, 1, 1], [], []>} : vector<80x128xf32>, vector<128x128xf32>, vector<80x128xf32> -> vector<80x128xf32>
    %13 = vector.broadcast %5 : vector<1x128xf32> to vector<80x128xf32>
    %14 = arith.addf %12, %13 : vector<80x128xf32>
    %cst_11 = arith.constant 0.000000e+00 : f32
    %15 = vector.broadcast %cst_11 : f32 to vector<80x128xf32>
    %16 = arith.maximumf %14, %15 : vector<80x128xf32>
    %cst_12 = arith.constant dense<0.000000e+00> : vector<80x128xf32>
    %17 = tpu.matmul %16, %3, %cst_12 {dimension_numbers = #tpu.dot_dimension_numbers<[1], [0], [0], [1], [0, 0, 1, 1], [], []>} : vector<80x128xf32>, vector<128x128xf32>, vector<80x128xf32> -> vector<80x128xf32>
    %18 = vector.broadcast %6 : vector<1x128xf32> to vector<80x128xf32>
    %19 = arith.addf %17, %18 : vector<80x128xf32>
    %cst_13 = arith.constant dense<0xFF800000> : vector<80xf32>
    %20 = vector.multi_reduction <maximumf>, %19, %cst_13 [1] : vector<80x128xf32> to vector<80xf32>
    %21 = vector.shape_cast %20 : vector<80xf32> to vector<80x1xf32>
    %22 = vector.broadcast %21 : vector<80x1xf32> to vector<80x128xf32>
    %23 = arith.subf %19, %22 : vector<80x128xf32>
    %24 = math.exp %23 : vector<80x128xf32>
    %cst_14 = arith.constant dense<0.000000e+00> : vector<80xf32>
    %25 = vector.multi_reduction <add>, %24, %cst_14 [1] : vector<80x128xf32> to vector<80xf32>
    %26 = vector.shape_cast %25 : vector<80xf32> to vector<80x1xf32>
    %27 = vector.broadcast %26 : vector<80x1xf32> to vector<80x128xf32>
    %28 = arith.divf %24, %27 : vector<80x128xf32>
    %c0_15 = arith.constant 0 : index
    %c0_16 = arith.constant 0 : index
    %29 = vector.load %arg4[%c0_15, %c0_16] : memref<80x128xf32, #tpu.memory_space<vmem>>, vector<80x128xf32>
    tpu.vector_store %arg4[%c0_15, %c0_16], %28 {strides = array<i32>} : memref<80x128xf32, #tpu.memory_space<vmem>>, vector<80x128xf32>,
    return
  }
  func.func @transform_0(%arg0: i32) -> (i32, i32) {
    %c0_i32 = arith.constant 0 : i32
    %c0_i32_0 = arith.constant 0 : i32
    return %arg0, %c0_i32 : i32, i32
  }
  func.func @transform_1(%arg0: i32) -> (i32, i32) {
    %c0_i32 = arith.constant 0 : i32
    %c0_i32_0 = arith.constant 0 : i32
    %c0_i32_1 = arith.constant 0 : i32
    return %c0_i32, %c0_i32_0 : i32, i32
  }
  func.func @transform_2(%arg0: i32) -> (i32, i32) {
    %c0_i32 = arith.constant 0 : i32
    %c0_i32_0 = arith.constant 0 : i32
    %c0_i32_1 = arith.constant 0 : i32
    return %c0_i32, %c0_i32_0 : i32, i32
  }
  func.func @transform_3(%arg0: i32) -> (i32, i32) {
    %c0_i32 = arith.constant 0 : i32
    %c0_i32_0 = arith.constant 0 : i32
    return %arg0, %c0_i32 : i32, i32
  }
}

</mosaic_0001>

<llo_original>
// kernel: actor_forward_packed.1
$region0: #{actor_forward_packed.1}
  #allocation0 [shape = 'u32[]', space=smem, size = 0x4, offset = 0x4, fixed_abs, tag = 'smem constant byte address 0x4 - core index']
  #allocation1 [shape = 'u32[144,128]{1,0:T(1,128)}', space=vmem, size = 0x12000, scoped, tag = 'internal scratch']
  %s0 = inlined_call_operand.vmem [shape: f32[80,32], index: 0, kind: input, shape index: {}]
  %s1 = inlined_call_operand.hbm [shape: f32[288,128], index: 1, kind: input, shape index: {}]
  %s2 = inlined_call_operand.vmem [shape: f32[3,128], index: 2, kind: input, shape index: {}]
  %s3 = inlined_call_operand.vmem [shape: f32[80,128], index: 3, kind: output, shape index: {}]
  %s4 = sld [smem:[#allocation0]]
  $region26: #{actor_forward_packed.1} parent=0
    _
  %s6 = ssub.s32 1, %s4
  %s7 = scalar_select 0, %s6, %s4
  $region1: #{actor_forward_packed.1} parent=0
    #allocation2 [shape = 'u8[147456]{0}', space=vmem, size = 0x24000, scoped, tag = 'input window, operand 1, single buffered']
    #allocation3 [shape = 's32[1]{0}', space=sflag, size = 0x4, scoped, tag = 'scoped memory for actor_forward_packed.1']
    %8 = vsyncpa [#allocation3], 0
    // Predicated region
    $region2: #{actor_forward_packed.1} parent=1 // pred_check
      _
    $region3: #{actor_forward_packed.1} parent=1 // pred_check_branch
      %10 = sbr.rel (0) target = $region5
    $region4: #{actor_forward_packed.1} parent=1 // pred_region
      _
    $region5: #{actor_forward_packed.1} parent=1 // pred_fallthru
      _
    // Predicated region
    $region6: #{actor_forward_packed.1} parent=1 // pred_check
      _
    $region7: #{actor_forward_packed.1} parent=1 // pred_check_branch
      %12 = sbr.rel (0) target = $region9
    $region8: #{actor_forward_packed.1} parent=1 // pred_region
      %s14 = ssub.s32 4608, 4608
      %15 = vsyncadd [#allocation3], %s14
      %s16 = sshll.u32 [#allocation2], 4
      %s17 = int_to_ptr.vmem [resolvable:$true] %s16
      %22 = dma.hbm_to_vmem [thread:$0]  %s1, 4608, %s17, [#allocation3], 128, 128, 8
    $region9: #{actor_forward_packed.1} parent=1 // pred_fallthru
      _
    // Predicated region
    $region10: #{actor_forward_packed.1} parent=1 // pred_check
      _
    $region11: #{actor_forward_packed.1} parent=1 // pred_check_branch
      %24 = sbr.rel (0) target = $region13
    $region12: #{actor_forward_packed.1} parent=1 // pred_region
      _
    $region13: #{actor_forward_packed.1} parent=1 // pred_fallthru
      _
    // Predicated region
    $region14: #{actor_forward_packed.1} parent=1 // pred_check
      _
    $region15: #{actor_forward_packed.1} parent=1 // pred_check_branch
      %26 = sbr.rel (0) target = $region17
    $region16: #{actor_forward_packed.1} parent=1 // pred_region
      %27 = dma.done [#allocation3], 4608
    $region17: #{actor_forward_packed.1} parent=1 // pred_fallthru
      _
    %v28 = vld [vmem:[%s0] sm:$0xff]
    %v29 = vld [vmem:[%s0 + $0x8] sm:$0xff]
    %v30 = vld [vmem:[%s0 + $0x10] sm:$0xff]
    %v31 = vld [vmem:[%s0 + $0x18] sm:$0xff]
    %v32 = vld [vmem:[%s0 + $0x20] sm:$0xff]
    %v33 = vld [vmem:[%s0 + $0x28] sm:$0xff]
    %v34 = vld [vmem:[%s0 + $0x30] sm:$0xff]
    %v35 = vld [vmem:[%s0 + $0x38] sm:$0xff]
    %v36 = vld [vmem:[%s0 + $0x40] sm:$0xff]
    %v37 = vld [vmem:[%s0 + $0x48] sm:$0xff]
    %v38 = vld [vmem:[#allocation2] sm:$0xff]
    %v39 = vld [vmem:[#allocation2 + $0x8] sm:$0xff]
    %v40 = vld [vmem:[#allocation2 + $0x10] sm:$0xff]
    %v41 = vld [vmem:[#allocation2 + $0x18] sm:$0xff]
    %v42 = vld [vmem:[#allocation2 + $0x20] sm:$0xff]
    %v43 = vld [vmem:[#allocation2 + $0x28] sm:$0xff]
    %v44 = vld [vmem:[#allocation2 + $0x30] sm:$0xff]
    %v45 = vld [vmem:[#allocation2 + $0x38] sm:$0xff]
    %v46 = vld [vmem:[#allocation2 + $0x40] sm:$0xff]
    %v47 = vld [vmem:[#allocation2 + $0x48] sm:$0xff]
    %v48 = vld [vmem:[#allocation2 + $0x50] sm:$0xff]
    %v49 = vld [vmem:[#allocation2 + $0x58] sm:$0xff]
    %v50 = vld [vmem:[#allocation2 + $0x60] sm:$0xff]
    %v51 = vld [vmem:[#allocation2 + $0x68] sm:$0xff]
    %v52 = vld [vmem:[#allocation2 + $0x70] sm:$0xff]
    %v53 = vld [vmem:[#allocation2 + $0x78] sm:$0xff]
    %v54 = vld [vmem:[#allocation2 + $0x80] sm:$0xff]
    %v55 = vld [vmem:[#allocation2 + $0x88] sm:$0xff]
    %v56 = vld [vmem:[#allocation2 + $0x90] sm:$0xff]
    %v57 = vld [vmem:[#allocation2 + $0x98] sm:$0xff]
    %v58 = vld [vmem:[#allocation2 + $0xa0] sm:$0xff]
    %v59 = vld [vmem:[#allocation2 + $0xa8] sm:$0xff]
    %v60 = vld [vmem:[#allocation2 + $0xb0] sm:$0xff]
    %v61 = vld [vmem:[#allocation2 + $0xb8] sm:$0xff]
    %v62 = vld [vmem:[#allocation2 + $0xc0] sm:$0xff]
    %v63 = vld [vmem:[#allocation2 + $0xc8] sm:$0xff]
    %v64 = vld [vmem:[#allocation2 + $0xd0] sm:$0xff]
    %v65 = vld [vmem:[#allocation2 + $0xd8] sm:$0xff]
    %v66 = vld [vmem:[#allocation2 + $0xe0] sm:$0xff]
    %v67 = vld [vmem:[#allocation2 + $0xe8] sm:$0xff]
    %v68 = vld [vmem:[#allocation2 + $0xf0] sm:$0xff]
    %v69 = vld [vmem:[#allocation2 + $0xf8] sm:$0xff]
    %v70 = vld [vmem:[#allocation2 + $0x100] sm:$0xff]
    %v71 = vld [vmem:[#allocation2 + $0x108] sm:$0xff]
    %v72 = vld [vmem:[#allocation2 + $0x110] sm:$0xff]
    %v73 = vld [vmem:[#allocation2 + $0x118] sm:$0xff]
    %v74 = vld [vmem:[%s2] sm:$0x1]
    %v75 = vld [vmem:[%s2 + $0x1] sm:$0x1]
    %v76 = vld [vmem:[%s2 + $0x2] sm:$0x1]
    %v77 = vlaneseq
    %v78 = vshrl.u32 %v77, 7
    %v79 = vsub.s32 0, %v78
    %v80 = vrot.slane %v74, %v79
    %vm81 = vcmask 261120
    %v83 = vsel %vm81, %v28, 0
    %v86 = vsel %vm81, %v29, 0
    %v89 = vsel %vm81, %v30, 0
    %v92 = vsel %vm81, %v31, 0
    %v95 = vsel %vm81, %v32, 0
    %v98 = vsel %vm81, %v33, 0
    %v101 = vsel %vm81, %v34, 0
    %v104 = vsel %vm81, %v35, 0
    %v107 = vsel %vm81, %v36, 0
    %v110 = vsel %vm81, %v37, 0
    %112 = vmatprep.subr.mxu0 0.0
    %113 = vmatpush1.msra.mxu0 %v38
    %114 = vmatprep.subr.mxu0 0.0
    %115 = vmatpush1.msra.mxu0 %v39
    %116 = vmatprep.subr.mxu0 0.0
    %117 = vmatpush1.msra.mxu0 %v40
    %118 = vmatprep.subr.mxu0 0.0
    %119 = vmatpush1.msra.mxu0 %v41
    %120 = vmatprep.subr.mxu0 0.0
    %121 = vmatpush1.msra.mxu0 0.0
    %122 = vmatprep.subr.mxu0 0.0
    %123 = vmatpush1.msra.mxu0 0.0
    %124 = vmatprep.subr.mxu0 0.0
    %125 = vmatpush1.msra.mxu0 0.0
    %126 = vmatprep.subr.mxu0 0.0
    %127 = vmatpush1.msra.mxu0 0.0
    %128 = vmatprep.subr.mxu0 0.0
    %129 = vmatpush1.msra.mxu0 0.0
    %130 = vmatprep.subr.mxu0 0.0
    %131 = vmatpush1.msra.mxu0 0.0
    %132 = vmatprep.subr.mxu0 0.0
    %133 = vmatpush1.msra.mxu0 0.0
    %134 = vmatprep.subr.mxu0 0.0
    %135 = vmatpush1.msra.mxu0 0.0
    %136 = vmatprep.subr.mxu0 0.0
    %137 = vmatpush1.msra.mxu0 0.0
    %138 = vmatprep.subr.mxu0 0.0
    %139 = vmatpush1.msra.mxu0 0.0
    %140 = vmatprep.subr.mxu0 0.0
    %141 = vmatpush1.msra.mxu0 0.0
    %142 = vmatprep.subr.mxu0 0.0
    %143 = vmatpush1.msra.mxu0 0.0
    %144 = vmatprep.subr.mxu0 0.0
    %145 = vmatpush1.msra.mxu0 0.0
    %146 = vmatprep.subr.mxu0 0.0
    %147 = vmatpush1.msra.mxu0 0.0
    %148 = vmatprep.subr.mxu0 0.0
    %149 = vmatpush1.msra.mxu0 0.0
    %150 = vmatprep.subr.mxu0 0.0
    %151 = vmatpush1.msra.mxu0 0.0
    %152 = vmatprep.subr.mxu0 0.0
    %153 = vmatpush1.msra.mxu0 0.0
    %154 = vmatprep.subr.mxu0 0.0
    %155 = vmatpush1.msra.mxu0 0.0
    %156 = vmatprep.subr.mxu0 0.0
    %157 = vmatpush1.msra.mxu0 0.0
    %158 = vmatprep.subr.mxu0 0.0
    %159 = vmatpush1.msra.mxu0 0.0
    %160 = vmatprep.subr.mxu0 0.0
    %161 = vmatpush1.msra.mxu0 0.0
    %162 = vmatprep.subr.mxu0 0.0
    %163 = vmatpush1.msra.mxu0 0.0
    %164 = vmatprep.subr.mxu0 0.0
    %165 = vmatpush1.msra.mxu0 0.0
    %166 = vmatprep.subr.mxu0 0.0
    %167 = vmatpush1.msra.mxu0 0.0
    %168 = vmatprep.subr.mxu0 0.0
    %169 = vmatpush1.msra.mxu0 0.0
    %170 = vmatprep.subr.mxu0 0.0
    %171 = vmatpush1.msra.mxu0 0.0
    %172 = vmatprep.subr.mxu0 0.0
    %173 = vmatpush1.msra.mxu0 0.0
    %174 = vmatprep.subr.mxu0 0.0
    %175 = vmatpush1.msra.mxu0 0.0
    %176 = vmatprep.mubr.f32.mxu0 0.0
    %177 = vmatmul.mubr.f32.gmra.mrb[0].mxu0 %v83
    %v178 = vpop.f32.mrb[0].mxu0
    %v179 = vadd.f32 %v80, %v178
    %v180 = vpop.f32.mrb[0].mxu0
    %181 = vmatprep.mubr.f32.mxu0 0.0
    %182 = vmatmul.mubr.f32.gmra.mrb[0].mxu0 %v86
    %v183 = vpop.f32.mrb[0].mxu0
    %v184 = vadd.f32 %v80, %v183
    %v185 = vpop.f32.mrb[0].mxu0
    %186 = vmatprep.mubr.f32.mxu0 0.0
    %187 = vmatmul.mubr.f32.gmra.mrb[0].mxu0 %v89
    %v188 = vpop.f32.mrb[0].mxu0
    %v189 = vadd.f32 %v80, %v188
    %v190 = vpop.f32.mrb[0].mxu0
    %191 = vmatprep.mubr.f32.mxu0 0.0
    %192 = vmatmul.mubr.f32.gmra.mrb[0].mxu0 %v92
    %v193 = vpop.f32.mrb[0].mxu0
    %v194 = vadd.f32 %v80, %v193
    %v195 = vpop.f32.mrb[0].mxu0
    %196 = vmatprep.mubr.f32.mxu0 0.0
    %197 = vmatmul.mubr.f32.gmra.mrb[0].mxu0 %v95
    %v198 = vpop.f32.mrb[0].mxu0
    %v199 = vadd.f32 %v80, %v198
    %v200 = vpop.f32.mrb[0].mxu0
    %201 = vmatprep.mubr.f32.mxu0 0.0
    %202 = vmatmul.mubr.f32.gmra.mrb[0].mxu0 %v98
    %v203 = vpop.f32.mrb[0].mxu0
    %v204 = vadd.f32 %v80, %v203
    %v205 = vpop.f32.mrb[0].mxu0
    %206 = vmatprep.mubr.f32.mxu0 0.0
    %207 = vmatmul.mubr.f32.gmra.mrb[0].mxu0 %v101
    %v208 = vpop.f32.mrb[0].mxu0
    %v209 = vadd.f32 %v80, %v208
    %v210 = vpop.f32.mrb[0].mxu0
    %211 = vmatprep.mubr.f32.mxu0 0.0
    %212 = vmatmul.mubr.f32.gmra.mrb[0].mxu0 %v104
    %v213 = vpop.f32.mrb[0].mxu0
    %v214 = vadd.f32 %v80, %v213
    %v215 = vpop.f32.mrb[0].mxu0
    %216 = vmatprep.mubr.f32.mxu0 0.0
    %217 = vmatmul.mubr.f32.gmra.mrb[0].mxu0 %v107
    %v218 = vpop.f32.mrb[0].mxu0
    %v219 = vadd.f32 %v80, %v218
    %v220 = vpop.f32.mrb[0].mxu0
    %221 = vmatprep.mubr.f32.mxu0 0.0
    %222 = vmatmul.mubr.f32.gmra.mrb[0].mxu0 %v110
    %v223 = vpop.f32.mrb[0].mxu0
    %v224 = vadd.f32 %v80, %v223
    %v225 = vpop.f32.mrb[0].mxu0
    %226 = vdwg.mxu0
    %v227 = vmax.f32 %v179, 0.0
    %v228 = vmax.f32 %v184, 0.0
    %v229 = vmax.f32 %v189, 0.0
    %v230 = vmax.f32 %v194, 0.0
    %v231 = vmax.f32 %v199, 0.0
    %v232 = vmax.f32 %v204, 0.0
    %v233 = vmax.f32 %v209, 0.0
    %v234 = vmax.f32 %v214, 0.0
    %v235 = vmax.f32 %v219, 0.0
    %v236 = vmax.f32 %v224, 0.0
    %v237 = vlaneseq
    %v238 = vshrl.u32 %v237, 7
    %v239 = vsub.s32 0, %v238
    %v240 = vrot.slane %v75, %v239
    %241 = vmatprep.subr.mxu0 0.0
    %242 = vmatpush1.msra.mxu0 %v42
    %243 = vmatprep.subr.mxu0 0.0
    %244 = vmatpush1.msra.mxu0 %v43
    %245 = vmatprep.subr.mxu0 0.0
    %246 = vmatpush1.msra.mxu0 %v44
    %247 = vmatprep.subr.mxu0 0.0
    %248 = vmatpush1.msra.mxu0 %v45
    %249 = vmatprep.subr.mxu0 0.0
    %250 = vmatpush1.msra.mxu0 %v46
    %251 = vmatprep.subr.mxu0 0.0
    %252 = vmatpush1.msra.mxu0 %v47
    %253 = vmatprep.subr.mxu0 0.0
    %254 = vmatpush1.msra.mxu0 %v48
    %255 = vmatprep.subr.mxu0 0.0
    %256 = vmatpush1.msra.mxu0 %v49
    %257 = vmatprep.subr.mxu0 0.0
    %258 = vmatpush1.msra.mxu0 %v50
    %259 = vmatprep.subr.mxu0 0.0
    %260 = vmatpush1.msra.mxu0 %v51
    %261 = vmatprep.subr.mxu0 0.0
    %262 = vmatpush1.msra.mxu0 %v52
    %263 = vmatprep.subr.mxu0 0.0
    %264 = vmatpush1.msra.mxu0 %v53
    %265 = vmatprep.subr.mxu0 0.0
    %266 = vmatpush1.msra.mxu0 %v54
    %267 = vmatprep.subr.mxu0 0.0
    %268 = vmatpush1.msra.mxu0 %v55
    %269 = vmatprep.subr.mxu0 0.0
    %270 = vmatpush1.msra.mxu0 %v56
    %271 = vmatprep.subr.mxu0 0.0
    %272 = vmatpush1.msra.mxu0 %v57
    %273 = vmatprep.subr.mxu0 0.0
    %274 = vmatpush1.msra.mxu0 0.0
    %275 = vmatprep.subr.mxu0 0.0
    %276 = vmatpush1.msra.mxu0 0.0
    %277 = vmatprep.subr.mxu0 0.0
    %278 = vmatpush1.msra.mxu0 0.0
    %279 = vmatprep.subr.mxu0 0.0
    %280 = vmatpush1.msra.mxu0 0.0
    %281 = vmatprep.subr.mxu0 0.0
    %282 = vmatpush1.msra.mxu0 0.0
    %283 = vmatprep.subr.mxu0 0.0
    %284 = vmatpush1.msra.mxu0 0.0
    %285 = vmatprep.subr.mxu0 0.0
    %286 = vmatpush1.msra.mxu0 0.0
    %287 = vmatprep.subr.mxu0 0.0
    %288 = vmatpush1.msra.mxu0 0.0
    %289 = vmatprep.subr.mxu0 0.0
    %290 = vmatpush1.msra.mxu0 0.0
    %291 = vmatprep.subr.mxu0 0.0
    %292 = vmatpush1.msra.mxu0 0.0
    %293 = vmatprep.subr.mxu0 0.0
    %294 = vmatpush1.msra.mxu0 0.0
    %295 = vmatprep.subr.mxu0 0.0
    %296 = vmatpush1.msra.mxu0 0.0
    %297 = vmatprep.subr.mxu0 0.0
    %298 = vmatpush1.msra.mxu0 0.0
    %299 = vmatprep.subr.mxu0 0.0
    %300 = vmatpush1.msra.mxu0 0.0
    %301 = vmatprep.subr.mxu0 0.0
    %302 = vmatpush1.msra.mxu0 0.0
    %303 = vmatprep.subr.mxu0 0.0
    %304 = vmatpush1.msra.mxu0 0.0
    %305 = vmatprep.mubr.f32.mxu0 0.0
    %306 = vmatmul.mubr.f32.gmra.mrb[0].mxu0 %v227
    %v307 = vpop.f32.mrb[0].mxu0
    %v308 = vadd.f32 %v240, %v307
    %v309 = vpop.f32.mrb[0].mxu0
    %310 = vmatprep.mubr.f32.mxu0 0.0
    %311 = vmatmul.mubr.f32.gmra.mrb[0].mxu0 %v228
    %v312 = vpop.f32.mrb[0].mxu0
    %v313 = vadd.f32 %v240, %v312
    %v314 = vpop.f32.mrb[0].mxu0
    %315 = vmatprep.mubr.f32.mxu0 0.0
    %316 = vmatmul.mubr.f32.gmra.mrb[0].mxu0 %v229
    %v317 = vpop.f32.mrb[0].mxu0
    %v318 = vadd.f32 %v240, %v317
    %v319 = vpop.f32.mrb[0].mxu0
    %320 = vmatprep.mubr.f32.mxu0 0.0
    %321 = vmatmul.mubr.f32.gmra.mrb[0].mxu0 %v230
    %v322 = vpop.f32.mrb[0].mxu0
    %v323 = vadd.f32 %v240, %v322
    %v324 = vpop.f32.mrb[0].mxu0
    %325 = vmatprep.mubr.f32.mxu0 0.0
    %326 = vmatmul.mubr.f32.gmra.mrb[0].mxu0 %v231
    %v327 = vpop.f32.mrb[0].mxu0
    %v328 = vadd.f32 %v240, %v327
    %v329 = vpop.f32.mrb[0].mxu0
    %330 = vmatprep.mubr.f32.mxu0 0.0
    %331 = vmatmul.mubr.f32.gmra.mrb[0].mxu0 %v232
    %v332 = vpop.f32.mrb[0].mxu0
    %v333 = vadd.f32 %v240, %v332
    %v334 = vpop.f32.mrb[0].mxu0
    %335 = vmatprep.mubr.f32.mxu0 0.0
    %336 = vmatmul.mubr.f32.gmra.mrb[0].mxu0 %v233
    %v337 = vpop.f32.mrb[0].mxu0
    %v338 = vadd.f32 %v240, %v337
    %v339 = vpop.f32.mrb[0].mxu0
    %340 = vmatprep.mubr.f32.mxu0 0.0
    %341 = vmatmul.mubr.f32.gmra.mrb[0].mxu0 %v234
    %v342 = vpop.f32.mrb[0].mxu0
    %v343 = vadd.f32 %v240, %v342
    %v344 = vpop.f32.mrb[0].mxu0
    %345 = vmatprep.mubr.f32.mxu0 0.0
    %346 = vmatmul.mubr.f32.gmra.mrb[0].mxu0 %v235
    %v347 = vpop.f32.mrb[0].mxu0
    %v348 = vadd.f32 %v240, %v347
    %v349 = vpop.f32.mrb[0].mxu0
    %350 = vmatprep.mubr.f32.mxu0 0.0
    %351 = vmatmul.mubr.f32.gmra.mrb[0].mxu0 %v236
    %v352 = vpop.f32.mrb[0].mxu0
    %v353 = vadd.f32 %v240, %v352
    %v354 = vpop.f32.mrb[0].mxu0
    %355 = vdwg.mxu0
    %v356 = vmax.f32 %v308, 0.0
    %v357 = vmax.f32 %v313, 0.0
    %v358 = vmax.f32 %v318, 0.0
    %v359 = vmax.f32 %v323, 0.0
    %v360 = vmax.f32 %v328, 0.0
    %v361 = vmax.f32 %v333, 0.0
    %v362 = vmax.f32 %v338, 0.0
    %v363 = vmax.f32 %v343, 0.0
    %v364 = vmax.f32 %v348, 0.0
    %v365 = vmax.f32 %v353, 0.0
    %v366 = vlaneseq
    %v367 = vshrl.u32 %v366, 7
    %v368 = vsub.s32 0, %v367
    %v369 = vrot.slane %v76, %v368
    %370 = vmatprep.subr.mxu0 0.0
    %371 = vmatpush1.msra.mxu0 %v58
    %372 = vmatprep.subr.mxu0 0.0
    %373 = vmatpush1.msra.mxu0 %v59
    %374 = vmatprep.subr.mxu0 0.0
    %375 = vmatpush1.msra.mxu0 %v60
    %376 = vmatprep.subr.mxu0 0.0
    %377 = vmatpush1.msra.mxu0 %v61
    %378 = vmatprep.subr.mxu0 0.0
    %379 = vmatpush1.msra.mxu0 %v62
    %380 = vmatprep.subr.mxu0 0.0
    %381 = vmatpush1.msra.mxu0 %v63
    %382 = vmatprep.subr.mxu0 0.0
    %383 = vmatpush1.msra.mxu0 %v64
    %384 = vmatprep.subr.mxu0 0.0
    %385 = vmatpush1.msra.mxu0 %v65
    %386 = vmatprep.subr.mxu0 0.0
    %387 = vmatpush1.msra.mxu0 %v66
    %388 = vmatprep.subr.mxu0 0.0
    %389 = vmatpush1.msra.mxu0 %v67
    %390 = vmatprep.subr.mxu0 0.0
    %391 = vmatpush1.msra.mxu0 %v68
    %392 = vmatprep.subr.mxu0 0.0
    %393 = vmatpush1.msra.mxu0 %v69
    %394 = vmatprep.subr.mxu0 0.0
    %395 = vmatpush1.msra.mxu0 %v70
    %396 = vmatprep.subr.mxu0 0.0
    %397 = vmatpush1.msra.mxu0 %v71
    %398 = vmatprep.subr.mxu0 0.0
    %399 = vmatpush1.msra.mxu0 %v72
    %400 = vmatprep.subr.mxu0 0.0
    %401 = vmatpush1.msra.mxu0 %v73
    %402 = vmatprep.subr.mxu0 0.0
    %403 = vmatpush1.msra.mxu0 0.0
    %404 = vmatprep.subr.mxu0 0.0
    %405 = vmatpush1.msra.mxu0 0.0
    %406 = vmatprep.subr.mxu0 0.0
    %407 = vmatpush1.msra.mxu0 0.0
    %408 = vmatprep.subr.mxu0 0.0
    %409 = vmatpush1.msra.mxu0 0.0
    %410 = vmatprep.subr.mxu0 0.0
    %411 = vmatpush1.msra.mxu0 0.0
    %412 = vmatprep.subr.mxu0 0.0
    %413 = vmatpush1.msra.mxu0 0.0
    %414 = vmatprep.subr.mxu0 0.0
    %415 = vmatpush1.msra.mxu0 0.0
    %416 = vmatprep.subr.mxu0 0.0
    %417 = vmatpush1.msra.mxu0 0.0
    %418 = vmatprep.subr.mxu0 0.0
    %419 = vmatpush1.msra.mxu0 0.0
    %420 = vmatprep.subr.mxu0 0.0
    %421 = vmatpush1.msra.mxu0 0.0
    %422 = vmatprep.subr.mxu0 0.0
    %423 = vmatpush1.msra.mxu0 0.0
    %424 = vmatprep.subr.mxu0 0.0
    %425 = vmatpush1.msra.mxu0 0.0
    %426 = vmatprep.subr.mxu0 0.0
    %427 = vmatpush1.msra.mxu0 0.0
    %428 = vmatprep.subr.mxu0 0.0
    %429 = vmatpush1.msra.mxu0 0.0
    %430 = vmatprep.subr.mxu0 0.0
    %431 = vmatpush1.msra.mxu0 0.0
    %432 = vmatprep.subr.mxu0 0.0
    %433 = vmatpush1.msra.mxu0 0.0
    %434 = vmatprep.mubr.f32.mxu0 0.0
    %435 = vmatmul.mubr.f32.gmra.mrb[0].mxu0 %v356
    %v436 = vpop.f32.mrb[0].mxu0
    %v437 = vadd.f32 %v369, %v436
    %v438 = vpop.f32.mrb[0].mxu0
    %439 = vmatprep.mubr.f32.mxu0 0.0
    %440 = vmatmul.mubr.f32.gmra.mrb[0].mxu0 %v357
    %v441 = vpop.f32.mrb[0].mxu0
    %v442 = vadd.f32 %v369, %v441
    %v443 = vpop.f32.mrb[0].mxu0
    %444 = vmatprep.mubr.f32.mxu0 0.0
    %445 = vmatmul.mubr.f32.gmra.mrb[0].mxu0 %v358
    %v446 = vpop.f32.mrb[0].mxu0
    %v447 = vadd.f32 %v369, %v446
    %v448 = vpop.f32.mrb[0].mxu0
    %449 = vmatprep.mubr.f32.mxu0 0.0
    %450 = vmatmul.mubr.f32.gmra.mrb[0].mxu0 %v359
    %v451 = vpop.f32.mrb[0].mxu0
    %v452 = vadd.f32 %v369, %v451
    %v453 = vpop.f32.mrb[0].mxu0
    %454 = vmatprep.mubr.f32.mxu0 0.0
    %455 = vmatmul.mubr.f32.gmra.mrb[0].mxu0 %v360
    %v456 = vpop.f32.mrb[0].mxu0
    %v457 = vadd.f32 %v369, %v456
    %v458 = vpop.f32.mrb[0].mxu0
    %459 = vmatprep.mubr.f32.mxu0 0.0
    %460 = vmatmul.mubr.f32.gmra.mrb[0].mxu0 %v361
    %v461 = vpop.f32.mrb[0].mxu0
    %v462 = vadd.f32 %v369, %v461
    %v463 = vpop.f32.mrb[0].mxu0
    %464 = vmatprep.mubr.f32.mxu0 0.0
    %465 = vmatmul.mubr.f32.gmra.mrb[0].mxu0 %v362
    %v466 = vpop.f32.mrb[0].mxu0
    %v467 = vadd.f32 %v369, %v466
    %v468 = vpop.f32.mrb[0].mxu0
    %469 = vmatprep.mubr.f32.mxu0 0.0
    %470 = vmatmul.mubr.f32.gmra.mrb[0].mxu0 %v363
    %v471 = vpop.f32.mrb[0].mxu0
    %v472 = vadd.f32 %v369, %v471
    %v473 = vpop.f32.mrb[0].mxu0
    %474 = vmatprep.mubr.f32.mxu0 0.0
    %475 = vmatmul.mubr.f32.gmra.mrb[0].mxu0 %v364
    %v476 = vpop.f32.mrb[0].mxu0
    %v477 = vadd.f32 %v369, %v476
    %v478 = vpop.f32.mrb[0].mxu0
    %479 = vmatprep.mubr.f32.mxu0 0.0
    %480 = vmatmul.mubr.f32.gmra.mrb[0].mxu0 %v365
    %v481 = vpop.f32.mrb[0].mxu0
    %v482 = vadd.f32 %v369, %v481
    %v483 = vpop.f32.mrb[0].mxu0
    %484 = vdwg.mxu0
    %485 = vmax.xlane.f32.xlu0 %v437
    %v486 = vpop.xlane.xlu0 %485
    %487 = vmax.xlane.f32.xlu0 %v442
    %v488 = vpop.xlane.xlu0 %487
    %489 = vmax.xlane.f32.xlu0 %v447
    %v490 = vpop.xlane.xlu0 %489
    %491 = vmax.xlane.f32.xlu0 %v452
    %v492 = vpop.xlane.xlu0 %491
    %493 = vmax.xlane.f32.xlu0 %v457
    %v494 = vpop.xlane.xlu0 %493
    %495 = vmax.xlane.f32.xlu0 %v462
    %v496 = vpop.xlane.xlu0 %495
    %497 = vmax.xlane.f32.xlu0 %v467
    %v498 = vpop.xlane.xlu0 %497
    %499 = vmax.xlane.f32.xlu0 %v472
    %v500 = vpop.xlane.xlu0 %499
    %501 = vmax.xlane.f32.xlu0 %v477
    %v502 = vpop.xlane.xlu0 %501
    %503 = vmax.xlane.f32.xlu0 %v482
    %v504 = vpop.xlane.xlu0 %503
    %v505 = vsub.f32 %v437, %v486
    %v506 = vsub.f32 %v442, %v488
    %v507 = vsub.f32 %v447, %v490
    %v508 = vsub.f32 %v452, %v492
    %v509 = vsub.f32 %v457, %v494
    %v510 = vsub.f32 %v462, %v496
    %v511 = vsub.f32 %v467, %v498
    %v512 = vsub.f32 %v472, %v500
    %v513 = vsub.f32 %v477, %v502
    %v514 = vsub.f32 %v482, %v504
    %v515 = vmul.f32 %v505, 1.442695
    %v516 = vpow.pop %v515
    %v517 = vmul.f32 %v506, 1.442695
    %v518 = vpow.pop %v517
    %v519 = vmul.f32 %v507, 1.442695
    %v520 = vpow.pop %v519
    %v521 = vmul.f32 %v508, 1.442695
    %v522 = vpow.pop %v521
    %v523 = vmul.f32 %v509, 1.442695
    %v524 = vpow.pop %v523
    %v525 = vmul.f32 %v510, 1.442695
    %v526 = vpow.pop %v525
    %v527 = vmul.f32 %v511, 1.442695
    %v528 = vpow.pop %v527
    %v529 = vmul.f32 %v512, 1.442695
    %v530 = vpow.pop %v529
    %v531 = vmul.f32 %v513, 1.442695
    %v532 = vpow.pop %v531
    %v533 = vmul.f32 %v514, 1.442695
    %v534 = vpow.pop %v533
    %535 = vadd.xlane.f32.xlu0 %v516
    %v536 = vpop.xlane.xlu0 %535
    %537 = vadd.xlane.f32.xlu0 %v518
    %v538 = vpop.xlane.xlu0 %537
    %539 = vadd.xlane.f32.xlu0 %v520
    %v540 = vpop.xlane.xlu0 %539
    %541 = vadd.xlane.f32.xlu0 %v522
    %v542 = vpop.xlane.xlu0 %541
    %543 = vadd.xlane.f32.xlu0 %v524
    %v544 = vpop.xlane.xlu0 %543
    %545 = vadd.xlane.f32.xlu0 %v526
    %v546 = vpop.xlane.xlu0 %545
    %547 = vadd.xlane.f32.xlu0 %v528
    %v548 = vpop.xlane.xlu0 %547
    %549 = vadd.xlane.f32.xlu0 %v530
    %v550 = vpop.xlane.xlu0 %549
    %551 = vadd.xlane.f32.xlu0 %v532
    %v552 = vpop.xlane.xlu0 %551
    %553 = vadd.xlane.f32.xlu0 %v534
    %v554 = vpop.xlane.xlu0 %553
    %v555 = vrcp.pop %v536
    %v556 = vmul.f32 %v516, %v555
    %v557 = vrcp.pop %v538
    %v558 = vmul.f32 %v518, %v557
    %v559 = vrcp.pop %v540
    %v560 = vmul.f32 %v520, %v559
    %v561 = vrcp.pop %v542
    %v562 = vmul.f32 %v522, %v561
    %v563 = vrcp.pop %v544
    %v564 = vmul.f32 %v524, %v563
    %v565 = vrcp.pop %v546
    %v566 = vmul.f32 %v526, %v565
    %v567 = vrcp.pop %v548
    %v568 = vmul.f32 %v528, %v567
    %v569 = vrcp.pop %v550
    %v570 = vmul.f32 %v530, %v569
    %v571 = vrcp.pop %v552
    %v572 = vmul.f32 %v532, %v571
    %v573 = vrcp.pop %v554
    %v574 = vmul.f32 %v534, %v573
    %575 = vst [vmem:[%s3] sm:$0xff] %v556
    %576 = vst [vmem:[%s3 + $0x8] sm:$0xff] %v558
    %577 = vst [vmem:[%s3 + $0x10] sm:$0xff] %v560
    %578 = vst [vmem:[%s3 + $0x18] sm:$0xff] %v562
    %579 = vst [vmem:[%s3 + $0x20] sm:$0xff] %v564
    %580 = vst [vmem:[%s3 + $0x28] sm:$0xff] %v566
    %581 = vst [vmem:[%s3 + $0x30] sm:$0xff] %v568
    %582 = vst [vmem:[%s3 + $0x38] sm:$0xff] %v570
    %583 = vst [vmem:[%s3 + $0x40] sm:$0xff] %v572
    %584 = vst [vmem:[%s3 + $0x48] sm:$0xff] %v574
    // Predicated region
    $region18: #{actor_forward_packed.1} parent=1 // pred_check
      _
    $region19: #{actor_forward_packed.1} parent=1 // pred_check_branch
      %586 = sbr.rel (0) target = $region21
    $region20: #{actor_forward_packed.1} parent=1 // pred_region
      _
    $region21: #{actor_forward_packed.1} parent=1 // pred_fallthru
      _
    // Predicated region
    $region22: #{actor_forward_packed.1} parent=1 // pred_check
      _
    $region23: #{actor_forward_packed.1} parent=1 // pred_check_branch
      %588 = sbr.rel (0) target = $region25
    $region24: #{actor_forward_packed.1} parent=1 // pred_region
      _
    $region25: #{actor_forward_packed.1} parent=1 // pred_fallthru
      _
    %589 = vsyncpa [#allocation3], 1

</llo_original>
